<compile_context>
chip_gen: v7x
topology: tpu7x:2x2x1
jax: 0.10.0
libtpu: 0.0.40
codegen_flags: <defaults>
</compile_context>

<pallas_src>
import functools

import jax
import jax.numpy as jnp
from jax.experimental import pallas as pl
from jax.experimental.pallas import tpu as pltpu

HIDDEN_SIZE = 64


def critic_mlp_kernel(x_ref, w1_ref, b1_ref, w2_ref, b2_ref, w3_ref, b3_ref, o_ref):
    x = x_ref[...]                      # (TB, S) f32
    w1 = w1_ref[...]                    # (S, H)  f32
    tb = x.shape[0]
    state_n = x.shape[1]

    # --- Layer 1 on the VPU: state_n is tiny, so a (TB,S)@(S,H) MXU op would use only
    #     S of 128+ contraction rows and add an MXU round-trip to a latency-bound kernel.
    h1 = jnp.broadcast_to(b1_ref[...], (tb, HIDDEN_SIZE))
    for j in range(state_n):            # static, unrolled: S broadcast multiply-adds
        h1 = h1 + x[:, j:j + 1] * w1[j:j + 1, :]
    h1 = jnp.maximum(h1, 0.0)

    # --- Layer 2 on the MXU: (TB,H)@(H,H). Operands may be bf16 (v6e/v7x fast path),
    #     accumulation is f32; bias + ReLU stay f32 on the VPU (v5e-safe).
    w2 = w2_ref[...]
    h2 = jnp.dot(h1.astype(w2.dtype), w2, preferred_element_type=jnp.float32)
    h2 = jnp.maximum(h2 + b2_ref[...], 0.0)

    # --- Output layer, lane-dense: contract h2's hidden axis against the single w3 row,
    #     producing (1, TB) so the batch maps onto lanes for an unmasked store.
    w3 = w3_ref[...]                    # (1, H)
    y = jax.lax.dot_general(
        w3, h2.astype(w3.dtype),
        dimension_numbers=(((1,), (1,)), ((), ())),
        preferred_element_type=jnp.float32,
    )                                    # (1, TB) f32
    o_ref[...] = y + b3_ref[0]           # scalar bias from SMEM


@functools.partial(jax.jit, static_argnames=("tile_b", "use_bf16_matmul"))
def critic_net_forward(x, params, *, tile_b=512, use_bf16_matmul=True):
    """x: (B, state_n) f32.  params: w1,b1,w2,b2,w3,b3 with weights stored as (in, out)."""
    B, state_n = x.shape

    w1 = params["w1"]                                    # (S, H)
    b1 = params["b1"].reshape(1, HIDDEN_SIZE)            # (1, H)
    w2 = params["w2"]                                    # (H, H)
    b2 = params["b2"].reshape(1, HIDDEN_SIZE)            # (1, H)
    w3_row = params["w3"].reshape(HIDDEN_SIZE, 1).T      # (1, H)
    b3 = params["b3"].reshape(1).astype(jnp.float32)     # (1,) scalar -> SMEM

    if use_bf16_matmul:
        # bf16 MXU operands (v6e/v7x native); accumulation stays f32 in-kernel.
        w2 = w2.astype(jnp.bfloat16)
        w3_row = w3_row.astype(jnp.bfloat16)

    # Tile choice + padding. Single-tile case: round B up to a sublane multiple (block ==
    # full padded array, so any size is legal). Multi-tile case: tile_b is a multiple of
    # 128 so the (1, TILE_B) output blocks are lane-dense and x blocks are sublane-aligned.
    if B <= tile_b:
        tb = max(8, ((B + 7) // 8) * 8)
    else:
        tb = tile_b
    b_pad = ((B + tb - 1) // tb) * tb
    if b_pad != B:
        x = jnp.pad(x, ((0, b_pad - B), (0, 0)))
    n_tiles = b_pad // tb

    out = pl.pallas_call(
        critic_mlp_kernel,
        out_shape=jax.ShapeDtypeStruct((1, b_pad), jnp.float32),
        grid=(n_tiles,),
        in_specs=[
            pl.BlockSpec((tb, state_n), lambda i: (i, 0)),                 # x tile
            pl.BlockSpec((state_n, HIDDEN_SIZE), lambda i: (0, 0)),        # w1 (resident)
            pl.BlockSpec((1, HIDDEN_SIZE), lambda i: (0, 0)),              # b1 (resident)
            pl.BlockSpec((HIDDEN_SIZE, HIDDEN_SIZE), lambda i: (0, 0)),    # w2 (resident)
            pl.BlockSpec((1, HIDDEN_SIZE), lambda i: (0, 0)),              # b2 (resident)
            pl.BlockSpec((1, HIDDEN_SIZE), lambda i: (0, 0)),              # w3 row (resident)
            pl.BlockSpec(memory_space=pltpu.MemorySpace.SMEM),             # b3 scalar
        ],
        out_specs=pl.BlockSpec((1, tb), lambda i: (0, i)),                 # lane-dense out
        compiler_params=pltpu.CompilerParams(
            dimension_semantics=("parallel",),
        ),
    )(x, w1, b1, w2, b2, w3_row, b3)

    return out[0, :B].reshape(B, 1)


def init_params(key, state_n):
    """Mirror torch.nn.Linear default init: U(-1/sqrt(fan_in), 1/sqrt(fan_in))."""
    k1, k2, k3, k4, k5, k6 = jax.random.split(key, 6)

    def lin(kw, kb, fan_in, fan_out):
        bound = 1.0 / jnp.sqrt(fan_in)
        w = jax.random.uniform(kw, (fan_in, fan_out), jnp.float32, -bound, bound)
        b = jax.random.uniform(kb, (fan_out,), jnp.float32, -bound, bound)
        return w, b

    w1, b1 = lin(k1, k2, state_n, HIDDEN_SIZE)
    w2, b2 = lin(k3, k4, HIDDEN_SIZE, HIDDEN_SIZE)
    w3, b3 = lin(k5, k6, HIDDEN_SIZE, 1)
    return {"w1": w1, "b1": b1, "w2": w2, "b2": b2, "w3": w3, "b3": b3}


def critic_net_ref(x, params):
    """Pure-JAX reference (full-precision matmuls) for correctness checking."""
    dot = lambda a, b: jnp.dot(a, b, precision=jax.lax.Precision.HIGHEST)
    h = jnp.maximum(dot(x, params["w1"]) + params["b1"], 0.0)
    h = jnp.maximum(dot(h, params["w2"]) + params["b2"], 0.0)
    return dot(h, params["w3"]) + params["b3"]


if __name__ == "__main__":
    key = jax.random.PRNGKey(0)
    k_param, k_x = jax.random.split(key)

    STATE_N = 3   # Pendulum-v1 observation dim
    BATCH = 8

    params = init_params(k_param, STATE_N)
    x = jax.random.normal(k_x, (BATCH, STATE_N), dtype=jnp.float32)
    ref = critic_net_ref(x, params)

    # f32 MXU path (single-tile grid) — tight check.
    out_f32 = jax.block_until_ready(
        critic_net_forward(x, params, use_bf16_matmul=False))
    assert out_f32.shape == (BATCH, 1), out_f32.shape
    assert jnp.allclose(out_f32, ref, atol=1e-4, rtol=1e-4), "f32 path mismatch"

    # bf16-operand MXU path (default; v6e/v7x fast path) — quantized operands, f32 accum.
    out_bf16 = jax.block_until_ready(
        critic_net_forward(x, params, use_bf16_matmul=True))
    assert jnp.allclose(out_bf16, ref, atol=3e-2, rtol=3e-2), "bf16 path mismatch"

    # Multi-tile / padded-batch path (grid=2, lane-dense 512-wide output blocks).
    x_big = jax.random.normal(jax.random.PRNGKey(1), (1000, STATE_N), dtype=jnp.float32)
    out_big = jax.block_until_ready(
        critic_net_forward(x_big, params, tile_b=512, use_bf16_matmul=False))
    ref_big = critic_net_ref(x_big, params)
    assert out_big.shape == (1000, 1), out_big.shape
    assert jnp.allclose(out_big, ref_big, atol=1e-4, rtol=1e-4), "tiled path mismatch"

    print("KERNEL_OK")
</pallas_src>

<mosaic_0001>
module attributes {stable_mosaic.version = 11 : i64} {
  func.func @critic_mlp_kernel(%arg0: i32, %arg1: memref<8x3xf32, #tpu.memory_space<vmem>>, %arg2: memref<3x64xf32, #tpu.memory_space<vmem>>, %arg3: memref<1x64xf32, #tpu.memory_space<vmem>>, %arg4: memref<64x64xf32, #tpu.memory_space<vmem>>, %arg5: memref<1x64xf32, #tpu.memory_space<vmem>>, %arg6: memref<1x64xf32, #tpu.memory_space<vmem>>, %arg7: memref<1xf32, #tpu.memory_space<smem>>, %arg8: memref<1x8xf32, #tpu.memory_space<vmem>>) attributes {dimension_semantics = [#tpu.dimension_semantics<parallel>], iteration_bounds = array<i64: 1>, scalar_prefetch = 0 : i64, scratch_operands = 0 : i64, tpu.core_type = #tpu.core_type<tc>, window_params = [{transform_indices = @transform_0, window_bounds = array<i64: 8, 3>}, {pipeline_mode = #tpu.pipeline_mode<synchronous>, transform_indices = @transform_1, window_bounds = array<i64: 3, 64>}, {pipeline_mode = #tpu.pipeline_mode<synchronous>, transform_indices = @transform_2, window_bounds = array<i64: 1, 64>}, {pipeline_mode = #tpu.pipeline_mode<synchronous>, transform_indices = @transform_3, window_bounds = array<i64: 64, 64>}, {pipeline_mode = #tpu.pipeline_mode<synchronous>, transform_indices = @transform_4, window_bounds = array<i64: 1, 64>}, {pipeline_mode = #tpu.pipeline_mode<synchronous>, transform_indices = @transform_5, window_bounds = array<i64: 1, 64>}, {transform_indices = @transform_6, window_bounds = array<i64: 1>}, {transform_indices = @transform_7, window_bounds = array<i64: 1, 8>}]} {
    %c0 = arith.constant 0 : index
    %c0_0 = arith.constant 0 : index
    %0 = vector.load %arg1[%c0, %c0_0] : memref<8x3xf32, #tpu.memory_space<vmem>>, vector<8x3xf32>
    %c0_1 = arith.constant 0 : index
    %c0_2 = arith.constant 0 : index
    %1 = vector.load %arg2[%c0_1, %c0_2] : memref<3x64xf32, #tpu.memory_space<vmem>>, vector<3x64xf32>
    %c0_3 = arith.constant 0 : index
    %c0_4 = arith.constant 0 : index
    %2 = vector.load %arg3[%c0_3, %c0_4] : memref<1x64xf32, #tpu.memory_space<vmem>>, vector<1x64xf32>
    %3 = vector.shape_cast %2 : vector<1x64xf32> to vector<1x64xf32>
    %4 = vector.broadcast %3 : vector<1x64xf32> to vector<8x64xf32>
    %5 = vector.extract_strided_slice %0 {offsets = [0, 0], sizes = [8, 1], strides = [1, 1]} : vector<8x3xf32> to vector<8x1xf32>
    %6 = vector.extract_strided_slice %1 {offsets = [0, 0], sizes = [1, 64], strides = [1, 1]} : vector<3x64xf32> to vector<1x64xf32>
    %7 = vector.broadcast %5 : vector<8x1xf32> to vector<8x64xf32>
    %8 = vector.broadcast %6 : vector<1x64xf32> to vector<8x64xf32>
    %9 = arith.mulf %7, %8 : vector<8x64xf32>
    %10 = arith.addf %4, %9 : vector<8x64xf32>
    %11 = vector.extract_strided_slice %0 {offsets = [0, 1], sizes = [8, 1], strides = [1, 1]} : vector<8x3xf32> to vector<8x1xf32>
    %12 = vector.extract_strided_slice %1 {offsets = [1, 0], sizes = [1, 64], strides = [1, 1]} : vector<3x64xf32> to vector<1x64xf32>
    %13 = vector.broadcast %11 : vector<8x1xf32> to vector<8x64xf32>
    %14 = vector.broadcast %12 : vector<1x64xf32> to vector<8x64xf32>
    %15 = arith.mulf %13, %14 : vector<8x64xf32>
    %16 = arith.addf %10, %15 : vector<8x64xf32>
    %17 = vector.extract_strided_slice %0 {offsets = [0, 2], sizes = [8, 1], strides = [1, 1]} : vector<8x3xf32> to vector<8x1xf32>
    %18 = vector.extract_strided_slice %1 {offsets = [2, 0], sizes = [1, 64], strides = [1, 1]} : vector<3x64xf32> to vector<1x64xf32>
    %19 = vector.broadcast %17 : vector<8x1xf32> to vector<8x64xf32>
    %20 = vector.broadcast %18 : vector<1x64xf32> to vector<8x64xf32>
    %21 = arith.mulf %19, %20 : vector<8x64xf32>
    %22 = arith.addf %16, %21 : vector<8x64xf32>
    %cst = arith.constant 0.000000e+00 : f32
    %23 = vector.broadcast %cst : f32 to vector<8x64xf32>
    %24 = arith.maximumf %22, %23 : vector<8x64xf32>
    %c0_5 = arith.constant 0 : index
    %c0_6 = arith.constant 0 : index
    %25 = vector.load %arg4[%c0_5, %c0_6] : memref<64x64xf32, #tpu.memory_space<vmem>>, vector<64x64xf32>
    %cst_7 = arith.constant dense<0.000000e+00> : vector<8x64xf32>
    %26 = tpu.matmul %24, %25, %cst_7 {dimension_numbers = #tpu.dot_dimension_numbers<[1], [0], [0], [1], [0, 0, 1, 1], [], []>} : vector<8x64xf32>, vector<64x64xf32>, vector<8x64xf32> -> vector<8x64xf32>
    %c0_8 = arith.constant 0 : index
    %c0_9 = arith.constant 0 : index
    %27 = vector.load %arg5[%c0_8, %c0_9] : memref<1x64xf32, #tpu.memory_space<vmem>>, vector<1x64xf32>
    %28 = vector.broadcast %27 : vector<1x64xf32> to vector<8x64xf32>
    %29 = arith.addf %26, %28 : vector<8x64xf32>
    %cst_10 = arith.constant 0.000000e+00 : f32
    %30 = vector.broadcast %cst_10 : f32 to vector<8x64xf32>
    %31 = arith.maximumf %29, %30 : vector<8x64xf32>
    %c0_11 = arith.constant 0 : index
    %c0_12 = arith.constant 0 : index
    %32 = vector.load %arg6[%c0_11, %c0_12] : memref<1x64xf32, #tpu.memory_space<vmem>>, vector<1x64xf32>
    %cst_13 = arith.constant dense<0.000000e+00> : vector<1x8xf32>
    %33 = tpu.matmul %32, %31, %cst_13 {dimension_numbers = #tpu.dot_dimension_numbers<[1], [1], [0], [0], [0, 0, 1, 0], [], []>} : vector<1x64xf32>, vector<8x64xf32>, vector<1x8xf32> -> vector<1x8xf32>
    %c0_14 = arith.constant 0 : index
    %34 = memref.load %arg7[%c0_14] : memref<1xf32, #tpu.memory_space<smem>>
    %35 = vector.broadcast %34 : f32 to vector<1x8xf32>
    %36 = arith.addf %33, %35 : vector<1x8xf32>
    %c0_15 = arith.constant 0 : index
    %c0_16 = arith.constant 0 : index
    %37 = vector.load %arg8[%c0_15, %c0_16] : memref<1x8xf32, #tpu.memory_space<vmem>>, vector<1x8xf32>
    tpu.vector_store %arg8[%c0_15, %c0_16], %36 {strides = array<i32>} : memref<1x8xf32, #tpu.memory_space<vmem>>, vector<1x8xf32>,
    return
  }
  func.func @transform_0(%arg0: i32) -> (i32, i32) {
    %c0_i32 = arith.constant 0 : i32
    %c0_i32_0 = arith.constant 0 : i32
    return %arg0, %c0_i32 : i32, i32
  }
  func.func @transform_1(%arg0: i32) -> (i32, i32) {
    %c0_i32 = arith.constant 0 : i32
    %c0_i32_0 = arith.constant 0 : i32
    %c0_i32_1 = arith.constant 0 : i32
    return %c0_i32, %c0_i32_0 : i32, i32
  }
  func.func @transform_2(%arg0: i32) -> (i32, i32) {
    %c0_i32 = arith.constant 0 : i32
    %c0_i32_0 = arith.constant 0 : i32
    %c0_i32_1 = arith.constant 0 : i32
    return %c0_i32, %c0_i32_0 : i32, i32
  }
  func.func @transform_3(%arg0: i32) -> (i32, i32) {
    %c0_i32 = arith.constant 0 : i32
    %c0_i32_0 = arith.constant 0 : i32
    %c0_i32_1 = arith.constant 0 : i32
    return %c0_i32, %c0_i32_0 : i32, i32
  }
  func.func @transform_4(%arg0: i32) -> (i32, i32) {
    %c0_i32 = arith.constant 0 : i32
    %c0_i32_0 = arith.constant 0 : i32
    %c0_i32_1 = arith.constant 0 : i32
    return %c0_i32, %c0_i32_0 : i32, i32
  }
  func.func @transform_5(%arg0: i32) -> (i32, i32) {
    %c0_i32 = arith.constant 0 : i32
    %c0_i32_0 = arith.constant 0 : i32
    %c0_i32_1 = arith.constant 0 : i32
    return %c0_i32, %c0_i32_0 : i32, i32
  }
  func.func @transform_6(%arg0: i32) -> i32 {
    %c0_i32 = arith.constant 0 : i32
    %c0_i32_0 = arith.constant 0 : i32
    return %c0_i32 : i32
  }
  func.func @transform_7(%arg0: i32) -> (i32, i32) {
    %c0_i32 = arith.constant 0 : i32
    %c0_i32_0 = arith.constant 0 : i32
    return %c0_i32, %arg0 : i32, i32
  }
}

</mosaic_0001>

<llo_original>
// kernel: critic_net_forward.1
$region0: #{critic_net_forward.1}
  #allocation0 [shape = 'u32[]', space=smem, size = 0x4, offset = 0x4, fixed_abs, tag = 'smem constant byte address 0x4 - core index']
  #allocation1 [shape = 'u32[144,128]{1,0:T(1,128)}', space=vmem, size = 0x12000, scoped, tag = 'internal scratch']
  #allocation2 [shape = 'f32[1]{0:T(128)S(6)}', space=smem, size = 0x200, scoped, tag = 'scoped memory for critic_net_forward.1']
  %s0 = inlined_call_operand.vmem [shape: f32[8,3], index: 0, kind: input, shape index: {}]
  %s1 = inlined_call_operand.vmem [shape: f32[3,64], index: 1, kind: input, shape index: {}]
  %s2 = inlined_call_operand.vmem [shape: f32[1,64], index: 2, kind: input, shape index: {}]
  %s3 = inlined_call_operand.hbm [shape: f32[64,64], index: 3, kind: input, shape index: {}]
  %s4 = inlined_call_operand.vmem [shape: f32[1,64], index: 4, kind: input, shape index: {}]
  %s5 = inlined_call_operand.vmem [shape: f32[1,64], index: 5, kind: input, shape index: {}]
  %s6 = inlined_call_operand.<no memory space> [shape: f32[1], index: 6, kind: input, shape index: {}]
  %s7 = inlined_call_operand.hbm [shape: f32[1,8], index: 7, kind: output, shape index: {}]
  %s8 = sld [smem:[#allocation0]]
  $region42: #{critic_net_forward.1} parent=0
    _
  %s10 = ssub.s32 1, %s8
  %s11 = scalar_select 0, %s10, %s8
  %12 = sst [smem:[#allocation2]] %s6
  $region1: #{critic_net_forward.1} parent=0
    #allocation3 [shape = 'u8[32768]{0}', space=vmem, size = 0x8000, scoped, tag = 'input window, operand 3, single buffered']
    #allocation4 [shape = 's32[1]{0}', space=sflag, size = 0x4, scoped, tag = 'scoped memory for critic_net_forward.1']
    #allocation5 [shape = 's32[1]{0}', space=sflag, size = 0x4, scoped, tag = 'scoped memory for critic_net_forward.1']
    #allocation6 [shape = 'u8[512]{0}', space=vmem, size = 0x400, scoped, tag = 'output window, operand 0, single buffered']
    %13 = vsyncpa [#allocation4], 0
    %14 = vsyncpa [#allocation5], 0
    // Predicated region
    $region2: #{critic_net_forward.1} parent=1 // pred_check
      _
    $region3: #{critic_net_forward.1} parent=1 // pred_check_branch
      %16 = sbr.rel (0) target = $region5
    $region4: #{critic_net_forward.1} parent=1 // pred_region
      _
    $region5: #{critic_net_forward.1} parent=1 // pred_fallthru
      _
    // Predicated region
    $region6: #{critic_net_forward.1} parent=1 // pred_check
      _
    $region7: #{critic_net_forward.1} parent=1 // pred_check_branch
      %18 = sbr.rel (0) target = $region9
    $region8: #{critic_net_forward.1} parent=1 // pred_region
      _
    $region9: #{critic_net_forward.1} parent=1 // pred_fallthru
      _
    // Predicated region
    $region10: #{critic_net_forward.1} parent=1 // pred_check
      _
    $region11: #{critic_net_forward.1} parent=1 // pred_check_branch
      %20 = sbr.rel (0) target = $region13
    $region12: #{critic_net_forward.1} parent=1 // pred_region
      _
    $region13: #{critic_net_forward.1} parent=1 // pred_fallthru
      _
    // Predicated region
    $region14: #{critic_net_forward.1} parent=1 // pred_check
      _
    $region15: #{critic_net_forward.1} parent=1 // pred_check_branch
      %22 = sbr.rel (0) target = $region17
    $region16: #{critic_net_forward.1} parent=1 // pred_region
      %s24 = ssub.s32 1024, 1024
      %25 = vsyncadd [#allocation4], %s24
      %s26 = sshll.u32 [#allocation3], 4
      %s27 = int_to_ptr.vmem [resolvable:$true] %s26
      %32 = dma.hbm_to_vmem [thread:$0]  %s3, 1024, %s27, [#allocation4], 128, 128, 8
    $region17: #{critic_net_forward.1} parent=1 // pred_fallthru
      _
    // Predicated region
    $region18: #{critic_net_forward.1} parent=1 // pred_check
      _
    $region19: #{critic_net_forward.1} parent=1 // pred_check_branch
      %34 = sbr.rel (0) target = $region21
    $region20: #{critic_net_forward.1} parent=1 // pred_region
      _
    $region21: #{critic_net_forward.1} parent=1 // pred_fallthru
      _
    // Predicated region
    $region22: #{critic_net_forward.1} parent=1 // pred_check
      _
    $region23: #{critic_net_forward.1} parent=1 // pred_check_branch
      %36 = sbr.rel (0) target = $region25
    $region24: #{critic_net_forward.1} parent=1 // pred_region
      _
    $region25: #{critic_net_forward.1} parent=1 // pred_fallthru
      _
    // Predicated region
    $region26: #{critic_net_forward.1} parent=1 // pred_check
      _
    $region27: #{critic_net_forward.1} parent=1 // pred_check_branch
      %38 = sbr.rel (0) target = $region29
    $region28: #{critic_net_forward.1} parent=1 // pred_region
      _
    $region29: #{critic_net_forward.1} parent=1 // pred_fallthru
      _
    // Predicated region
    $region30: #{critic_net_forward.1} parent=1 // pred_check
      _
    $region31: #{critic_net_forward.1} parent=1 // pred_check_branch
      %40 = sbr.rel (0) target = $region33
    $region32: #{critic_net_forward.1} parent=1 // pred_region
      %41 = dma.done [#allocation4], 1024
    $region33: #{critic_net_forward.1} parent=1 // pred_fallthru
      _
    %v42 = vld [vmem:[%s0] sm:$0xff]
    %v43 = vld [vmem:[%s1] sm:$0x7]
    %v44 = vld [vmem:[%s2] sm:$0x1]
    %v46 = vlaneseq
    %v47 = vshrl.u32 %v46, 7
    %v48 = vsub.s32 0, %v47
    %v49 = vrot.slane %v44, %v48
    %52 = vset.pattern.permute.xlu0 0
    %53 = vperm.xlu0 %52, %v42
    %v54 = vpop.permute.xlu0 %53
    %v56 = vlaneseq
    %v57 = vshrl.u32 %v56, 7
    %v58 = vsub.s32 0, %v57
    %v59 = vrot.slane %v43, %v58
    %v60 = vmul.f32 %v54, %v59
    %v61 = vadd.f32 %v49, %v60
    %62 = vset.pattern.permute.xlu0 1
    %63 = vperm.xlu0 %62, %v42
    %v64 = vpop.permute.xlu0 %63
    %v66 = vlaneseq
    %v67 = vshrl.u32 %v66, 7
    %v68 = vsub.s32 1, %v67
    %v69 = vrot.slane %v43, %v68
    %v70 = vmul.f32 %v64, %v69
    %v71 = vadd.f32 %v61, %v70
    %72 = vset.pattern.permute.xlu0 2
    %73 = vperm.xlu0 %72, %v42
    %v74 = vpop.permute.xlu0 %73
    %v76 = vlaneseq
    %v77 = vshrl.u32 %v76, 7
    %v78 = vsub.s32 2, %v77
    %v79 = vrot.slane %v43, %v78
    %v80 = vmul.f32 %v74, %v79
    %v81 = vadd.f32 %v71, %v80
    %v82 = vmax.f32 %v81, 0.0
    %v83 = vld [vmem:[#allocation3] sm:$0xff]
    %v84 = vld [vmem:[#allocation3 + $0x8] sm:$0xff]
    %v85 = vld [vmem:[#allocation3 + $0x10] sm:$0xff]
    %v86 = vld [vmem:[#allocation3 + $0x18] sm:$0xff]
    %v87 = vld [vmem:[#allocation3 + $0x20] sm:$0xff]
    %v88 = vld [vmem:[#allocation3 + $0x28] sm:$0xff]
    %v89 = vld [vmem:[#allocation3 + $0x30] sm:$0xff]
    %v90 = vld [vmem:[#allocation3 + $0x38] sm:$0xff]
    %v91 = vld [vmem:[%s4] sm:$0x1]
    %v93 = vlaneseq
    %v94 = vshrl.u32 %v93, 7
    %v95 = vsub.s32 0, %v94
    %v96 = vrot.slane %v91, %v95
    %vm98 = vcmask 523264
    %v100 = vsel %vm98, %v82, 0
    %102 = vmatprep.subr.mxu0 0.0
    %103 = vmatpush1.msra.mxu0 %v83
    %104 = vmatprep.subr.mxu0 0.0
    %105 = vmatpush1.msra.mxu0 %v84
    %106 = vmatprep.subr.mxu0 0.0
    %107 = vmatpush1.msra.mxu0 %v85
    %108 = vmatprep.subr.mxu0 0.0
    %109 = vmatpush1.msra.mxu0 %v86
    %110 = vmatprep.subr.mxu0 0.0
    %111 = vmatpush1.msra.mxu0 %v87
    %112 = vmatprep.subr.mxu0 0.0
    %113 = vmatpush1.msra.mxu0 %v88
    %114 = vmatprep.subr.mxu0 0.0
    %115 = vmatpush1.msra.mxu0 %v89
    %116 = vmatprep.subr.mxu0 0.0
    %117 = vmatpush1.msra.mxu0 %v90
    %118 = vmatprep.subr.mxu0 0.0
    %119 = vmatpush1.msra.mxu0 0.0
    %120 = vmatprep.subr.mxu0 0.0
    %121 = vmatpush1.msra.mxu0 0.0
    %122 = vmatprep.subr.mxu0 0.0
    %123 = vmatpush1.msra.mxu0 0.0
    %124 = vmatprep.subr.mxu0 0.0
    %125 = vmatpush1.msra.mxu0 0.0
    %126 = vmatprep.subr.mxu0 0.0
    %127 = vmatpush1.msra.mxu0 0.0
    %128 = vmatprep.subr.mxu0 0.0
    %129 = vmatpush1.msra.mxu0 0.0
    %130 = vmatprep.subr.mxu0 0.0
    %131 = vmatpush1.msra.mxu0 0.0
    %132 = vmatprep.subr.mxu0 0.0
    %133 = vmatpush1.msra.mxu0 0.0
    %134 = vmatprep.subr.mxu0 0.0
    %135 = vmatpush1.msra.mxu0 0.0
    %136 = vmatprep.subr.mxu0 0.0
    %137 = vmatpush1.msra.mxu0 0.0
    %138 = vmatprep.subr.mxu0 0.0
    %139 = vmatpush1.msra.mxu0 0.0
    %140 = vmatprep.subr.mxu0 0.0
    %141 = vmatpush1.msra.mxu0 0.0
    %142 = vmatprep.subr.mxu0 0.0
    %143 = vmatpush1.msra.mxu0 0.0
    %144 = vmatprep.subr.mxu0 0.0
    %145 = vmatpush1.msra.mxu0 0.0
    %146 = vmatprep.subr.mxu0 0.0
    %147 = vmatpush1.msra.mxu0 0.0
    %148 = vmatprep.subr.mxu0 0.0
    %149 = vmatpush1.msra.mxu0 0.0
    %150 = vmatprep.subr.mxu0 0.0
    %151 = vmatpush1.msra.mxu0 0.0
    %152 = vmatprep.subr.mxu0 0.0
    %153 = vmatpush1.msra.mxu0 0.0
    %154 = vmatprep.subr.mxu0 0.0
    %155 = vmatpush1.msra.mxu0 0.0
    %156 = vmatprep.subr.mxu0 0.0
    %157 = vmatpush1.msra.mxu0 0.0
    %158 = vmatprep.subr.mxu0 0.0
    %159 = vmatpush1.msra.mxu0 0.0
    %160 = vmatprep.subr.mxu0 0.0
    %161 = vmatpush1.msra.mxu0 0.0
    %162 = vmatprep.subr.mxu0 0.0
    %163 = vmatpush1.msra.mxu0 0.0
    %164 = vmatprep.subr.mxu0 0.0
    %165 = vmatpush1.msra.mxu0 0.0
    %166 = vmatprep.mubr.f32.mxu0 0.0
    %167 = vmatmul.mubr.f32.gmra.mrb[0].mxu0 %v100
    %v168 = vpop.f32.mrb[0].mxu0
    %v169 = vadd.f32 %v96, %v168
    %v170 = vpop.f32.mrb[0].mxu0
    %171 = vdwg.mxu0
    %v172 = vmax.f32 %v169, 0.0
    %v173 = vld [vmem:[%s5] sm:$0x1]
    %s174 = sld [smem:[#allocation2]]
    %v175 = vstv %s174
    %v177 = vsel %vm98, %v173, 0
    %v180 = vsel %vm98, %v172, 0
    %182 = vmatprep.subr.mxu0 0.0
    %183 = vmatpush1.xpose.msra.mxu0 %v180
    %184 = vmatprep.subr.mxu0 0.0
    %185 = vmatpush1.xpose.msra.mxu0 0.0
    %186 = vmatprep.subr.mxu0 0.0
    %187 = vmatpush1.xpose.msra.mxu0 0.0
    %188 = vmatprep.subr.mxu0 0.0
    %189 = vmatpush1.xpose.msra.mxu0 0.0
    %190 = vmatprep.subr.mxu0 0.0
    %191 = vmatpush1.xpose.msra.mxu0 0.0
    %192 = vmatprep.subr.mxu0 0.0
    %193 = vmatpush1.xpose.msra.mxu0 0.0
    %194 = vmatprep.subr.mxu0 0.0
    %195 = vmatpush1.xpose.msra.mxu0 0.0
    %196 = vmatprep.subr.mxu0 0.0
    %197 = vmatpush1.xpose.msra.mxu0 0.0
    %198 = vmatprep.subr.mxu0 0.0
    %199 = vmatpush1.xpose.msra.mxu0 0.0
    %200 = vmatprep.subr.mxu0 0.0
    %201 = vmatpush1.xpose.msra.mxu0 0.0
    %202 = vmatprep.subr.mxu0 0.0
    %203 = vmatpush1.xpose.msra.mxu0 0.0
    %204 = vmatprep.subr.mxu0 0.0
    %205 = vmatpush1.xpose.msra.mxu0 0.0
    %206 = vmatprep.subr.mxu0 0.0
    %207 = vmatpush1.xpose.msra.mxu0 0.0
    %208 = vmatprep.subr.mxu0 0.0
    %209 = vmatpush1.xpose.msra.mxu0 0.0
    %210 = vmatprep.subr.mxu0 0.0
    %211 = vmatpush1.xpose.msra.mxu0 0.0
    %212 = vmatprep.subr.mxu0 0.0
    %213 = vmatpush1.xpose.msra.mxu0 0.0
    %214 = vmatprep.subr.mxu0 0.0
    %215 = vmatpush1.xpose.msra.mxu0 0.0
    %216 = vmatprep.subr.mxu0 0.0
    %217 = vmatpush1.xpose.msra.mxu0 0.0
    %218 = vmatprep.subr.mxu0 0.0
    %219 = vmatpush1.xpose.msra.mxu0 0.0
    %220 = vmatprep.subr.mxu0 0.0
    %221 = vmatpush1.xpose.msra.mxu0 0.0
    %222 = vmatprep.subr.mxu0 0.0
    %223 = vmatpush1.xpose.msra.mxu0 0.0
    %224 = vmatprep.subr.mxu0 0.0
    %225 = vmatpush1.xpose.msra.mxu0 0.0
    %226 = vmatprep.subr.mxu0 0.0
    %227 = vmatpush1.xpose.msra.mxu0 0.0
    %228 = vmatprep.subr.mxu0 0.0
    %229 = vmatpush1.xpose.msra.mxu0 0.0
    %230 = vmatprep.subr.mxu0 0.0
    %231 = vmatpush1.xpose.msra.mxu0 0.0
    %232 = vmatprep.subr.mxu0 0.0
    %233 = vmatpush1.xpose.msra.mxu0 0.0
    %234 = vmatprep.subr.mxu0 0.0
    %235 = vmatpush1.xpose.msra.mxu0 0.0
    %236 = vmatprep.subr.mxu0 0.0
    %237 = vmatpush1.xpose.msra.mxu0 0.0
    %238 = vmatprep.subr.mxu0 0.0
    %239 = vmatpush1.xpose.msra.mxu0 0.0
    %240 = vmatprep.subr.mxu0 0.0
    %241 = vmatpush1.xpose.msra.mxu0 0.0
    %242 = vmatprep.subr.mxu0 0.0
    %243 = vmatpush1.xpose.msra.mxu0 0.0
    %244 = vmatprep.subr.mxu0 0.0
    %245 = vmatpush1.xpose.msra.mxu0 0.0
    %246 = vmatprep.mubr.f32.mxu0 0.0
    %247 = vmatmul.mubr.f32.gmra.mrb[0].mxu0 %v177
    %v248 = vpop.f32.mrb[0].mxu0
    %v249 = vadd.f32 %v175, %v248
    %v250 = vpop.f32.mrb[0].mxu0
    %251 = vdwg.mxu0
    %vm252 = vcmask 57344
    %253 = vst.msk [vmem:[#allocation6] sm:$0x1] %vm252, %v249
    // Predicated region
    $region34: #{critic_net_forward.1} parent=1 // pred_check
      _
    $region35: #{critic_net_forward.1} parent=1 // pred_check_branch
      %255 = sbr.rel (0) target = $region37
    $region36: #{critic_net_forward.1} parent=1 // pred_region
      %s257 = ssub.s32 16, 16
      %258 = vsyncadd [#allocation5], %s257
      %s260 = sshll.u32 [#allocation6], 4
      %s261 = int_to_ptr.vmem [resolvable:$true] %s260
      %263 = dma.vmem_to_hbm [thread:$0]  %s261, 16, %s7, [#allocation5]
    $region37: #{critic_net_forward.1} parent=1 // pred_fallthru
      _
    // Predicated region
    $region38: #{critic_net_forward.1} parent=1 // pred_check
      _
    $region39: #{critic_net_forward.1} parent=1 // pred_check_branch
      %265 = sbr.rel (0) target = $region41
    $region40: #{critic_net_forward.1} parent=1 // pred_region
      %266 = dma.done [#allocation5], 16
    $region41: #{critic_net_forward.1} parent=1 // pred_fallthru
      _
    %267 = vsyncpa [#allocation4], 1
    %268 = vsyncpa [#allocation5], 1

</llo_original>
